<compile_context>
chip_gen: v6e
topology: v6e:2x2x1
jax: 0.10.0
libtpu: 0.0.40
codegen_flags: <defaults>
</compile_context>

<pallas_src>
import jax
import jax.numpy as jnp
from jax import lax
from jax.experimental import pallas as pl
from jax.experimental.pallas import tpu as pltpu

N = 8            # SimCLR batch size (rows per instance, sublane-aligned)
D = 128          # encoding dim (lane-aligned)
TEMPERATURE = 0.5
COS_EPS = 1e-8   # torch.nn.CosineSimilarity default eps


def simclr_kernel(og_ref, aug_ref, w_ref, loss_ref):
    b = pl.program_id(0)

    og = og_ref[0]            # (N, D) f32
    aug = aug_ref[0]          # (N, D) f32
    w1t = w_ref[0]            # (D, D) = W1.T
    w2t = w_ref[1]            # (D, D) = W2.T

    # projection_head: Linear(no bias) -> ReLU -> Linear(no bias),
    # og+aug batched into one (2N, D) operand (in-kernel concat).
    # MXU operands in bf16, accumulation in f32; elementwise stays f32.
    x = jnp.concatenate([og, aug], axis=0)                              # (2N, D)
    h = jnp.maximum(
        jnp.dot(x.astype(jnp.bfloat16), w1t.astype(jnp.bfloat16),
                preferred_element_type=jnp.float32), 0.0)               # (2N, D)
    p = jnp.dot(h.astype(jnp.bfloat16), w2t.astype(jnp.bfloat16),
                preferred_element_type=jnp.float32)                     # (2N, D)

    og_p = p[:N, :]                                                     # (N, D)
    aug_p = p[N:, :]                                                    # (N, D)

    # Row-wise inverse norms on the EUP. Per-norm eps clamp on the squared
    # norm (== clamp_min(norm, eps)), matching torch cosine_similarity's impl.
    eps_sq = jnp.float32(COS_EPS * COS_EPS)
    inv_og = lax.rsqrt(jnp.maximum(jnp.sum(og_p * og_p, axis=1, keepdims=True), eps_sq))
    inv_aug = lax.rsqrt(jnp.maximum(jnp.sum(aug_p * aug_p, axis=1, keepdims=True), eps_sq))

    # Normalize rows; fold 1/temperature into the og side once.
    og_n = og_p * (inv_og * jnp.float32(1.0 / TEMPERATURE))             # (N, D)
    aug_n = aug_p * inv_aug                                             # (N, D)

    # sim[i, j] = cos(og_p[j], aug_p[i]) / T = aug_n[i] . og_n[j]
    sim = lax.dot_general(
        aug_n, og_n,
        dimension_numbers=(((1,), (1,)), ((), ())),
        preferred_element_type=jnp.float32,
    )                                                                   # (N, N)

    # Positive-pair (diagonal) logits as a dense row-wise reduce (f32 VPU).
    diag = jnp.sum(aug_n * og_n, axis=1, keepdims=True)                 # (N, 1)

    # cross_entropy(sim, arange(N)), reduction='mean'.
    # |sim| <= 1/T = 2 by construction, so no max-subtraction is needed.
    lse = jnp.log(jnp.sum(jnp.exp(sim), axis=1, keepdims=True))         # (N, 1)
    loss_ref[b, 0] = jnp.sum(lse - diag) * jnp.float32(1.0 / N)


def pack_weights(w1, w2):
    """Pack the two (out, in) Linear weights into one (2, D, D) operand,
    pre-transposed to (in, out). Do this once, outside the per-step path."""
    return jnp.stack([w1.T, w2.T], axis=0)


def simclr_loss(og_encodings, aug_encodings, w_packed):
    """og/aug: (B, N, D) — B independent SimCLR instances. Returns (B,) losses.

    Weights use a constant index_map so they are DMA'd into VMEM once and stay
    resident while the per-instance og/aug tiles stream through the grid."""
    B = og_encodings.shape[0]
    out = pl.pallas_call(
        simclr_kernel,
        out_shape=jax.ShapeDtypeStruct((B, 1), jnp.float32),
        grid=(B,),
        in_specs=[
            pl.BlockSpec((1, N, D), lambda b: (b, 0, 0)),
            pl.BlockSpec((1, N, D), lambda b: (b, 0, 0)),
            pl.BlockSpec((2, D, D), lambda b: (0, 0, 0)),
        ],
        # Whole (B, 1) output lives in SMEM; each program writes its own row.
        out_specs=pl.BlockSpec(memory_space=pltpu.MemorySpace.SMEM),
        compiler_params=pltpu.CompilerParams(
            dimension_semantics=("arbitrary",)),
    )(og_encodings, aug_encodings, w_packed)
    return out[:, 0]


def simclr_ref(og, aug, w1, w2):
    """Pure-JAX f32 reference mirroring the PyTorch module (one instance)."""
    hp = lax.Precision.HIGHEST

    def proj(x):
        h = jnp.maximum(jnp.dot(x, w1.T, precision=hp), 0.0)
        return jnp.dot(h, w2.T, precision=hp)

    og_p, aug_p = proj(og), proj(aug)
    og_nrm = jnp.maximum(jnp.linalg.norm(og_p, axis=1), COS_EPS)
    aug_nrm = jnp.maximum(jnp.linalg.norm(aug_p, axis=1), COS_EPS)
    # sim[i, j] = cos(og_p[j], aug_p[i]) / T
    sim = jnp.dot(aug_p, og_p.T, precision=hp) / (aug_nrm[:, None] * og_nrm[None, :])
    sim = sim / TEMPERATURE
    lse = jax.scipy.special.logsumexp(sim, axis=1)
    return jnp.mean(lse - jnp.diagonal(sim))


if __name__ == "__main__":
    B = 4  # number of SimCLR instances amortized over one pallas_call
    key = jax.random.PRNGKey(0)
    k_og, k_aug, k_w1, k_w2 = jax.random.split(key, 4)

    og = jax.random.normal(k_og, (B, N, D), dtype=jnp.float32)
    aug = jax.random.normal(k_aug, (B, N, D), dtype=jnp.float32)
    # nn.Linear(dim, dim, bias=False) weights, shape (out, in)
    w1 = jax.random.normal(k_w1, (D, D), dtype=jnp.float32) * (1.0 / jnp.sqrt(D))
    w2 = jax.random.normal(k_w2, (D, D), dtype=jnp.float32) * (1.0 / jnp.sqrt(D))

    w_packed = pack_weights(w1, w2)  # once, outside the per-call path

    losses = simclr_loss(og, aug, w_packed)
    jax.block_until_ready(losses)

    # Kernel uses bf16 MXU operands for the projection matmuls, so compare to
    # the full-f32 reference with a correspondingly loosened tolerance.
    for b in range(B):
        ref = simclr_ref(og[b], aug[b], w1, w2)
        assert jnp.allclose(losses[b], ref, rtol=2e-2, atol=2e-2), (b, losses[b], ref)

    print("KERNEL_OK")
</pallas_src>

<mosaic_0001>
module attributes {stable_mosaic.version = 11 : i64} {
  func.func @simclr_kernel(%arg0: i32, %arg1: memref<1x8x128xf32, #tpu.memory_space<vmem>>, %arg2: memref<1x8x128xf32, #tpu.memory_space<vmem>>, %arg3: memref<2x128x128xf32, #tpu.memory_space<vmem>>, %arg4: memref<4x1xf32, #tpu.memory_space<smem>>) attributes {dimension_semantics = [#tpu.dimension_semantics<arbitrary>], iteration_bounds = array<i64: 4>, scalar_prefetch = 0 : i64, scratch_operands = 0 : i64, tpu.core_type = #tpu.core_type<tc>, window_params = [{transform_indices = @transform_0, window_bounds = array<i64: 1, 8, 128>}, {transform_indices = @transform_1, window_bounds = array<i64: 1, 8, 128>}, {pipeline_mode = #tpu.pipeline_mode<synchronous>, transform_indices = @transform_2, window_bounds = array<i64: 2, 128, 128>}, {transform_indices = @transform_3, window_bounds = array<i64: 4, 1>}]} {
    %c0 = arith.constant 0 : index
    %c0_0 = arith.constant 0 : index
    %c0_1 = arith.constant 0 : index
    %0 = vector.load %arg1[%c0, %c0_0, %c0_1] : memref<1x8x128xf32, #tpu.memory_space<vmem>>, vector<1x8x128xf32>
    %1 = vector.shape_cast %0 : vector<1x8x128xf32> to vector<8x128xf32>
    %c0_2 = arith.constant 0 : index
    %c0_3 = arith.constant 0 : index
    %c0_4 = arith.constant 0 : index
    %2 = vector.load %arg2[%c0_2, %c0_3, %c0_4] : memref<1x8x128xf32, #tpu.memory_space<vmem>>, vector<1x8x128xf32>
    %3 = vector.shape_cast %2 : vector<1x8x128xf32> to vector<8x128xf32>
    %c0_5 = arith.constant 0 : index
    %c0_6 = arith.constant 0 : index
    %c0_7 = arith.constant 0 : index
    %4 = vector.load %arg3[%c0_5, %c0_6, %c0_7] : memref<2x128x128xf32, #tpu.memory_space<vmem>>, vector<1x128x128xf32>
    %5 = vector.shape_cast %4 : vector<1x128x128xf32> to vector<128x128xf32>
    %c1 = arith.constant 1 : index
    %c0_8 = arith.constant 0 : index
    %c0_9 = arith.constant 0 : index
    %6 = vector.load %arg3[%c1, %c0_8, %c0_9] : memref<2x128x128xf32, #tpu.memory_space<vmem>>, vector<1x128x128xf32>
    %7 = vector.shape_cast %6 : vector<1x128x128xf32> to vector<128x128xf32>
    %8 = tpu.concatenate %1, %3 in 0 : vector<8x128xf32>, vector<8x128xf32> -> vector<16x128xf32>
    %9 = arith.truncf %8 : vector<16x128xf32> to vector<16x128xbf16>
    %10 = arith.truncf %5 : vector<128x128xf32> to vector<128x128xbf16>
    %cst = arith.constant dense<0.000000e+00> : vector<16x128xf32>
    %11 = tpu.matmul %9, %10, %cst {dimension_numbers = #tpu.dot_dimension_numbers<[1], [0], [0], [1], [0, 0, 1, 1], [], []>} : vector<16x128xbf16>, vector<128x128xbf16>, vector<16x128xf32> -> vector<16x128xf32>
    %cst_10 = arith.constant 0.000000e+00 : f32
    %12 = vector.broadcast %cst_10 : f32 to vector<16x128xf32>
    %13 = arith.maximumf %11, %12 : vector<16x128xf32>
    %14 = arith.truncf %13 : vector<16x128xf32> to vector<16x128xbf16>
    %15 = arith.truncf %7 : vector<128x128xf32> to vector<128x128xbf16>
    %cst_11 = arith.constant dense<0.000000e+00> : vector<16x128xf32>
    %16 = tpu.matmul %14, %15, %cst_11 {dimension_numbers = #tpu.dot_dimension_numbers<[1], [0], [0], [1], [0, 0, 1, 1], [], []>} : vector<16x128xbf16>, vector<128x128xbf16>, vector<16x128xf32> -> vector<16x128xf32>
    %17 = vector.extract_strided_slice %16 {offsets = [0, 0], sizes = [8, 128], strides = [1, 1]} : vector<16x128xf32> to vector<8x128xf32>
    %18 = vector.extract_strided_slice %16 {offsets = [8, 0], sizes = [8, 128], strides = [1, 1]} : vector<16x128xf32> to vector<8x128xf32>
    %19 = arith.mulf %17, %17 : vector<8x128xf32>
    %cst_12 = arith.constant dense<0.000000e+00> : vector<8xf32>
    %20 = vector.multi_reduction <add>, %19, %cst_12 [1] : vector<8x128xf32> to vector<8xf32>
    %21 = vector.shape_cast %20 : vector<8xf32> to vector<8x1xf32>
    %cst_13 = arith.constant 1.000000e-16 : f32
    %22 = vector.broadcast %cst_13 : f32 to vector<8x1xf32>
    %23 = arith.maximumf %21, %22 : vector<8x1xf32>
    %24 = math.rsqrt %23 : vector<8x1xf32>
    %25 = arith.mulf %18, %18 : vector<8x128xf32>
    %cst_14 = arith.constant dense<0.000000e+00> : vector<8xf32>
    %26 = vector.multi_reduction <add>, %25, %cst_14 [1] : vector<8x128xf32> to vector<8xf32>
    %27 = vector.shape_cast %26 : vector<8xf32> to vector<8x1xf32>
    %cst_15 = arith.constant 1.000000e-16 : f32
    %28 = vector.broadcast %cst_15 : f32 to vector<8x1xf32>
    %29 = arith.maximumf %27, %28 : vector<8x1xf32>
    %30 = math.rsqrt %29 : vector<8x1xf32>
    %cst_16 = arith.constant 2.000000e+00 : f32
    %31 = vector.broadcast %cst_16 : f32 to vector<8x1xf32>
    %32 = arith.mulf %24, %31 : vector<8x1xf32>
    %33 = vector.broadcast %32 : vector<8x1xf32> to vector<8x128xf32>
    %34 = arith.mulf %17, %33 : vector<8x128xf32>
    %35 = vector.broadcast %30 : vector<8x1xf32> to vector<8x128xf32>
    %36 = arith.mulf %18, %35 : vector<8x128xf32>
    %cst_17 = arith.constant dense<0.000000e+00> : vector<8x8xf32>
    %37 = tpu.matmul %36, %34, %cst_17 {dimension_numbers = #tpu.dot_dimension_numbers<[1], [1], [0], [0], [0, 0, 1, 0], [], []>} : vector<8x128xf32>, vector<8x128xf32>, vector<8x8xf32> -> vector<8x8xf32>
    %38 = arith.mulf %36, %34 : vector<8x128xf32>
    %cst_18 = arith.constant dense<0.000000e+00> : vector<8xf32>
    %39 = vector.multi_reduction <add>, %38, %cst_18 [1] : vector<8x128xf32> to vector<8xf32>
    %40 = vector.shape_cast %39 : vector<8xf32> to vector<8x1xf32>
    %41 = math.exp %37 : vector<8x8xf32>
    %cst_19 = arith.constant dense<0.000000e+00> : vector<8xf32>
    %42 = vector.multi_reduction <add>, %41, %cst_19 [1] : vector<8x8xf32> to vector<8xf32>
    %43 = vector.shape_cast %42 : vector<8xf32> to vector<8x1xf32>
    %44 = math.log %43 : vector<8x1xf32>
    %45 = arith.subf %44, %40 : vector<8x1xf32>
    %46 = vector.shape_cast %45 : vector<8x1xf32> to vector<1x8x1xf32>
    %cst_20 = arith.constant dense<0.000000e+00> : vector<1xf32>
    %47 = vector.multi_reduction <add>, %46, %cst_20 [1, 2] : vector<1x8x1xf32> to vector<1xf32>
    %48 = vector.shape_cast %47 : vector<1xf32> to vector<1x1x1xf32>
    %49 = vector.extract %48[0, 0, 0] : f32 from vector<1x1x1xf32>
    %cst_21 = arith.constant 1.250000e-01 : f32
    %50 = arith.mulf %49, %cst_21 : f32
    %51 = arith.index_cast %arg0 : i32 to index
    %c0_22 = arith.constant 0 : index
    %52 = memref.load %arg4[%51, %c0_22] : memref<4x1xf32, #tpu.memory_space<smem>>
    memref.store %50, %arg4[%51, %c0_22] : memref<4x1xf32, #tpu.memory_space<smem>>
    return
  }
  func.func @transform_0(%arg0: i32) -> (i32, i32, i32) {
    %c0_i32 = arith.constant 0 : i32
    %c0_i32_0 = arith.constant 0 : i32
    %c0_i32_1 = arith.constant 0 : i32
    return %arg0, %c0_i32, %c0_i32_0 : i32, i32, i32
  }
  func.func @transform_1(%arg0: i32) -> (i32, i32, i32) {
    %c0_i32 = arith.constant 0 : i32
    %c0_i32_0 = arith.constant 0 : i32
    %c0_i32_1 = arith.constant 0 : i32
    return %arg0, %c0_i32, %c0_i32_0 : i32, i32, i32
  }
  func.func @transform_2(%arg0: i32) -> (i32, i32, i32) {
    %c0_i32 = arith.constant 0 : i32
    %c0_i32_0 = arith.constant 0 : i32
    %c0_i32_1 = arith.constant 0 : i32
    %c0_i32_2 = arith.constant 0 : i32
    return %c0_i32, %c0_i32_0, %c0_i32_1 : i32, i32, i32
  }
  func.func @transform_3(%arg0: i32) -> (i32, i32) {
    %c0_i32 = arith.constant 0 : i32
    %c0_i32_0 = arith.constant 0 : i32
    %c0_i32_1 = arith.constant 0 : i32
    return %c0_i32, %c0_i32_0 : i32, i32
  }
}

</mosaic_0001>

<llo_original>
// kernel: tpu_custom_call.1
$region0: #{tpu_custom_call.1}
  #allocation0 [shape = 'u32[]', space=smem, size = 0x4, offset = 0x4, fixed_abs, tag = 'smem constant byte address 0x4 - core index']
  #allocation1 [shape = 'u32[144,128]{1,0:T(1,128)}', space=vmem, size = 0x12000, scoped, tag = 'internal scratch']
  %s0 = inlined_call_operand.hbm [shape: f32[4,8,128], index: 0, kind: input, shape index: {}]
  %s1 = inlined_call_operand.hbm [shape: f32[4,8,128], index: 1, kind: input, shape index: {}]
  %s2 = inlined_call_operand.hbm [shape: f32[2,128,128], index: 2, kind: input, shape index: {}]
  %s3 = inlined_call_operand.vmem [shape: f32[4,1], index: 3, kind: output, shape index: {}]
  %s4 = sld [smem:[#allocation0]]
  $region57: #{tpu_custom_call.1} parent=0
    _
  %s6 = ssub.s32 1, %s4
  %s7 = scalar_select 0, %s6, %s4
  $region1: #{tpu_custom_call.1} parent=0
    #allocation2 [shape = 'u8[8192]{0}', space=vmem, size = 0x2000, scoped, tag = 'input window, operand 0']
    #allocation3 [shape = 's32[2]{0}', space=sflag, size = 0x8, scoped, tag = 'scoped memory for tpu_custom_call.1']
    #allocation4 [shape = 's32[2]{0}', space=sflag, size = 0x8, scoped, tag = 'scoped memory for tpu_custom_call.1']
    #allocation5 [shape = 'u8[8192]{0}', space=vmem, size = 0x2000, scoped, tag = 'input window, operand 1']
    #allocation6 [shape = 's32[2]{0}', space=sflag, size = 0x8, scoped, tag = 'scoped memory for tpu_custom_call.1']
    #allocation7 [shape = 'u8[131072]{0}', space=vmem, size = 0x20000, scoped, tag = 'input window, operand 2, single buffered']
    #allocation8 [shape = 'u8[2048]{0}', space=smem, size = 0x800, scoped, tag = 'output window, operand 0, single buffered']
    %8 = vsyncpa [#allocation3], 0
    %s9 = scalar_lea.sflag [#allocation3], 1
    %10 = vsyncpa %s9, 0
    %11 = vsyncpa [#allocation6], 0
    %s12 = scalar_lea.sflag [#allocation6], 1
    %13 = vsyncpa %s12, 0
    %14 = vsyncpa [#allocation4], 0
    loop: start=0, step=1, limit=6
    $region2: #{tpu_custom_call.1} parent=1 // loop_pre_header
      _
    $region3: #{tpu_custom_call.1} parent=1 // loop_header
      %s16 = sphi 0, %s20
      %p17 = scmp.ge.s32.totalorder %s16, 6
      %s26 = sphi 0, %s28
      %s29 = sphi 0, %s26
      %s30 = sphi 0, %s29
      %s46 = sphi 0, %s30
      %s52 = sphi 0, %s54
      %s55 = sphi 0, %s52
      %s56 = sphi 0, %s55
      %s72 = sphi 0, %s56
      %s76 = sphi 0, %s76
      %s78 = sphi 0, %s76
      %s79 = sphi 0, %s78
      %s93 = sphi 0, %s79
      %s97 = sphi 0, %s97
      %s99 = sphi 0, %s97
      %s100 = sphi 0, %s99
      %s114 = sphi 0, %s100
    $region4: #{tpu_custom_call.1} parent=1 // loop_header_branch
      %19 = sbr.rel (%p17) target = $region8
    $region5: #{tpu_custom_call.1} parent=1 // loop_body
      %s21 = ssub.s32 %s16, 1
      %s22 = ssub.s32 %s16, 2
      %s23 = sadd.s32 %s16, 1
      %s24 = ssub.s32 %s16, %s23
      %p25 = scmp.eq.s32.totalorder %s24, 0
      %s27 = sadd.s32 %s26, 1
      %s28 = scalar_select %p25, %s26, %s27
      %p31 = pneg %p25
      %p32 = scmp.eq.s32.totalorder %s16, 3
      %p33 = por %p31, %p32
      %p34 = scmp.ne.s32.totalorder %s26, %s29
      %p35 = scmp.eq.s32.totalorder %s16, 0
      %p36 = por %p34, %p35
      %p37 = scmp.ne.s32.totalorder %s26, %s29
      %p38 = scmp.eq.s32.totalorder %s21, 3
      %p39 = por %p37, %p38
      %p40 = scmp.ne.s32.totalorder %s29, %s30
      %p41 = scmp.eq.s32.totalorder %s21, 0
      %p42 = por %p40, %p41
      %p43 = scmp.ne.s32.totalorder %s29, %s30
      %p44 = scmp.eq.s32.totalorder %s22, 3
      %p45 = por %p43, %p44
      %p47 = scmp.ne.s32.totalorder %s30, %s46
      %p48 = scmp.eq.s32.totalorder %s22, 0
      %p49 = por %p47, %p48
      %s50 = ssub.s32 %s16, %s23
      %p51 = scmp.eq.s32.totalorder %s50, 0
      %s53 = sadd.s32 %s52, 1
      %s54 = scalar_select %p51, %s52, %s53
      %p57 = pneg %p51
      %p58 = scmp.eq.s32.totalorder %s16, 3
      %p59 = por %p57, %p58
      %p60 = scmp.ne.s32.totalorder %s52, %s55
      %p61 = scmp.eq.s32.totalorder %s16, 0
      %p62 = por %p60, %p61
      %p63 = scmp.ne.s32.totalorder %s52, %s55
      %p64 = scmp.eq.s32.totalorder %s21, 3
      %p65 = por %p63, %p64
      %p66 = scmp.ne.s32.totalorder %s55, %s56
      %p67 = scmp.eq.s32.totalorder %s21, 0
      %p68 = por %p66, %p67
      %p69 = scmp.ne.s32.totalorder %s55, %s56
      %p70 = scmp.eq.s32.totalorder %s22, 3
      %p71 = por %p69, %p70
      %p73 = scmp.ne.s32.totalorder %s56, %s72
      %p74 = scmp.eq.s32.totalorder %s22, 0
      %p75 = por %p73, %p74
      %s77 = sadd.s32 %s76, 1
      %p80 = scmp.eq.s32.totalorder %s16, 3
      %p81 = scmp.ne.s32.totalorder %s76, %s78
      %p82 = scmp.eq.s32.totalorder %s16, 0
      %p83 = por %p81, %p82
      %p84 = scmp.ne.s32.totalorder %s76, %s78
      %p85 = scmp.eq.s32.totalorder %s21, 3
      %p86 = por %p84, %p85
      %p87 = scmp.ne.s32.totalorder %s78, %s79
      %p88 = scmp.eq.s32.totalorder %s21, 0
      %p89 = por %p87, %p88
      %p90 = scmp.ne.s32.totalorder %s78, %s79
      %p91 = scmp.eq.s32.totalorder %s22, 3
      %p92 = por %p90, %p91
      %p94 = scmp.ne.s32.totalorder %s79, %s93
      %p95 = scmp.eq.s32.totalorder %s22, 0
      %p96 = por %p94, %p95
      %s98 = sadd.s32 %s97, 1
      %p101 = scmp.eq.s32.totalorder %s16, 3
      %p102 = scmp.ne.s32.totalorder %s97, %s99
      %p103 = scmp.eq.s32.totalorder %s16, 0
      %p104 = por %p102, %p103
      %p105 = scmp.ne.s32.totalorder %s97, %s99
      %p106 = scmp.eq.s32.totalorder %s21, 3
      %p107 = por %p105, %p106
      %p108 = scmp.ne.s32.totalorder %s99, %s100
      %p109 = scmp.eq.s32.totalorder %s21, 0
      %p110 = por %p108, %p109
      %p111 = scmp.ne.s32.totalorder %s99, %s100
      %p112 = scmp.eq.s32.totalorder %s22, 3
      %p113 = por %p111, %p112
      %p115 = scmp.ne.s32.totalorder %s100, %s114
      %p116 = scmp.eq.s32.totalorder %s22, 0
      %p117 = por %p115, %p116
      %p118 = scmp.le.s32.totalorder 1, %s16
      %p119 = scmp.lt.s32.totalorder %s16, 5
      %p120 = pnand %p118, %p119
      %p121 = pneg %p120
      // Predicated region
      $region9: #{tpu_custom_call.1} parent=5 // pred_check
        _
      $region10: #{tpu_custom_call.1} parent=5 // pred_check_branch
        %123 = sbr.rel (%p120) target = $region12
      $region11: #{tpu_custom_call.1} parent=5 // pred_region
        %s124 = ssub.s32 %s16, 1
        // Predicated region
        $region13: #{tpu_custom_call.1} parent=11 // pred_check
          %p125 = pneg %p89
        $region14: #{tpu_custom_call.1} parent=11 // pred_check_branch
          %127 = sbr.rel (%p125) target = $region16
        $region15: #{tpu_custom_call.1} parent=11 // pred_region
          %s129 = ssub.s32 4096, 4096
          %130 = vsyncadd [#allocation6], %s129
          %s131 = sshll.u32 [#allocation7], 4
          %s132 = int_to_ptr.vmem [resolvable:$true] %s131
          %137 = dma.hbm_to_vmem [thread:$0]  %s2, 4096, %s132, [#allocation6], 128, 128, 8
        $region16: #{tpu_custom_call.1} parent=11 // pred_fallthru
          _
      $region12: #{tpu_custom_call.1} parent=5 // pred_fallthru
        _
      %p138 = scmp.lt.s32.totalorder %s16, 4
      // Predicated region
      $region17: #{tpu_custom_call.1} parent=5 // pred_check
        %p139 = pneg %p138
      $region18: #{tpu_custom_call.1} parent=5 // pred_check_branch
        %141 = sbr.rel (%p139) target = $region20
      $region19: #{tpu_custom_call.1} parent=5 // pred_region
        // Predicated region
        $region21: #{tpu_custom_call.1} parent=19 // pred_check
          %p142 = pneg %p36
        $region22: #{tpu_custom_call.1} parent=19 // pred_check_branch
          %144 = sbr.rel (%p142) target = $region24
        $region23: #{tpu_custom_call.1} parent=19 // pred_region
          %s145 = sand.u32 %s26, 1
          %s146 = scalar_lea.sflag [#allocation3], %s145
          %s147 = sand.u32 %s26, 1
          %s148 = smul.addr %s147, 8
          %s149 = scalar_lea.vmem [#allocation2], %s148
          %s151 = ssub.s32 128, 128
          %152 = vsyncadd %s146, %s151
          %s153 = smul.addr %s16, 128
          %s154 = scalar_lea.hbm %s0, %s153
          %s156 = sshll.u32 %s149, 4
          %s157 = int_to_ptr.vmem [resolvable:$true] %s156
          %159 = dma.hbm_to_vmem [thread:$0]  %s154, 128, %s157, %s146
        $region24: #{tpu_custom_call.1} parent=19 // pred_fallthru
          _
        // Predicated region
        $region25: #{tpu_custom_call.1} parent=19 // pred_check
          %p160 = pneg %p62
        $region26: #{tpu_custom_call.1} parent=19 // pred_check_branch
          %162 = sbr.rel (%p160) target = $region28
        $region27: #{tpu_custom_call.1} parent=19 // pred_region
          %s163 = sand.u32 %s16, 1
          %s164 = scalar_lea.sflag [#allocation6], %s163
          %s165 = sand.u32 %s52, 1
          %s166 = smul.addr %s165, 8
          %s167 = scalar_lea.vmem [#allocation5], %s166
          %s169 = ssub.s32 128, 128
          %170 = vsyncadd %s164, %s169
          %s171 = smul.addr %s16, 128
          %s172 = scalar_lea.hbm %s1, %s171
          %s174 = sshll.u32 %s167, 4
          %s175 = int_to_ptr.vmem [resolvable:$true] %s174
          %177 = dma.hbm_to_vmem [thread:$0]  %s172, 128, %s175, %s164
        $region28: #{tpu_custom_call.1} parent=19 // pred_fallthru
          _
      $region20: #{tpu_custom_call.1} parent=5 // pred_fallthru
        _
      %p178 = scmp.le.s32.totalorder 1, %s16
      %p179 = scmp.lt.s32.totalorder %s16, 5
      %p180 = pnand %p178, %p179
      %p181 = pneg %p180
      // Predicated region
      $region29: #{tpu_custom_call.1} parent=5 // pred_check
        _
      $region30: #{tpu_custom_call.1} parent=5 // pred_check_branch
        %183 = sbr.rel (%p180) target = $region32
      $region31: #{tpu_custom_call.1} parent=5 // pred_region
        %s184 = ssub.s32 %s16, 1
        %s185 = sand.u32 %s29, 1
        %s186 = scalar_lea.sflag [#allocation3], %s185
        %s187 = sand.u32 %s29, 1
        %s188 = smul.addr %s187, 8
        %s189 = scalar_lea.vmem [#allocation2], %s188
        // Predicated region
        $region33: #{tpu_custom_call.1} parent=31 // pred_check
          %p190 = pneg %p42
        $region34: #{tpu_custom_call.1} parent=31 // pred_check_branch
          %192 = sbr.rel (%p190) target = $region36
        $region35: #{tpu_custom_call.1} parent=31 // pred_region
          %193 = dma.done %s186, 128
        $region36: #{tpu_custom_call.1} parent=31 // pred_fallthru
          _
        %s194 = sand.u32 %s21, 1
        %s195 = scalar_lea.sflag [#allocation6], %s194
        %s196 = sand.u32 %s55, 1
        %s197 = smul.addr %s196, 8
        %s198 = scalar_lea.vmem [#allocation5], %s197
        // Predicated region
        $region37: #{tpu_custom_call.1} parent=31 // pred_check
          %p199 = pneg %p68
        $region38: #{tpu_custom_call.1} parent=31 // pred_check_branch
          %201 = sbr.rel (%p199) target = $region40
        $region39: #{tpu_custom_call.1} parent=31 // pred_region
          %202 = dma.done %s195, 128
        $region40: #{tpu_custom_call.1} parent=31 // pred_fallthru
          _
        // Predicated region
        $region41: #{tpu_custom_call.1} parent=31 // pred_check
          %p203 = pneg %p89
        $region42: #{tpu_custom_call.1} parent=31 // pred_check_branch
          %205 = sbr.rel (%p203) target = $region44
        $region43: #{tpu_custom_call.1} parent=31 // pred_region
          %206 = dma.done [#allocation6], 4096
        $region44: #{tpu_custom_call.1} parent=31 // pred_fallthru
          _
        %s207 = sand.u32 %s29, 1
        %s208 = scalar_lea.sflag [#allocation3], %s207
        %s209 = sand.u32 %s29, 1
        %s210 = smul.addr %s209, 8
        %s211 = scalar_lea.vmem [#allocation2], %s210
        %p212 = pneg %p42
        %p213 = pneg %p39
        %s214 = sand.u32 %s21, 1
        %s215 = scalar_lea.sflag [#allocation6], %s214
        %s216 = sand.u32 %s55, 1
        %s217 = smul.addr %s216, 8
        %s218 = scalar_lea.vmem [#allocation5], %s217
        %p219 = pneg %p68
        %p220 = pneg %p65
        %p221 = pneg %p89
        %p222 = pneg %p86
        %p223 = pneg %p110
        %p224 = pneg %p107
        %v226 = vld [vmem:[%s189] sm:$0xff]
        %v227 = vld [vmem:[%s198] sm:$0xff]
        %v228 = vld [vmem:[#allocation7] sm:$0xff]
        %v229 = vld [vmem:[#allocation7 + $0x8] sm:$0xff]
        %v230 = vld [vmem:[#allocation7 + $0x10] sm:$0xff]
        %v231 = vld [vmem:[#allocation7 + $0x18] sm:$0xff]
        %v232 = vld [vmem:[#allocation7 + $0x20] sm:$0xff]
        %v233 = vld [vmem:[#allocation7 + $0x28] sm:$0xff]
        %v234 = vld [vmem:[#allocation7 + $0x30] sm:$0xff]
        %v235 = vld [vmem:[#allocation7 + $0x38] sm:$0xff]
        %v236 = vld [vmem:[#allocation7 + $0x40] sm:$0xff]
        %v237 = vld [vmem:[#allocation7 + $0x48] sm:$0xff]
        %v238 = vld [vmem:[#allocation7 + $0x50] sm:$0xff]
        %v239 = vld [vmem:[#allocation7 + $0x58] sm:$0xff]
        %v240 = vld [vmem:[#allocation7 + $0x60] sm:$0xff]
        %v241 = vld [vmem:[#allocation7 + $0x68] sm:$0xff]
        %v242 = vld [vmem:[#allocation7 + $0x70] sm:$0xff]
        %v243 = vld [vmem:[#allocation7 + $0x78] sm:$0xff]
        %s244 = scalar_lea.vmem [#allocation7], 128
        %v245 = vld [vmem:[%s244] sm:$0xff]
        %v246 = vld [vmem:[%s244 + $0x8] sm:$0xff]
        %v247 = vld [vmem:[%s244 + $0x10] sm:$0xff]
        %v248 = vld [vmem:[%s244 + $0x18] sm:$0xff]
        %v249 = vld [vmem:[%s244 + $0x20] sm:$0xff]
        %v250 = vld [vmem:[%s244 + $0x28] sm:$0xff]
        %v251 = vld [vmem:[%s244 + $0x30] sm:$0xff]
        %v252 = vld [vmem:[%s244 + $0x38] sm:$0xff]
        %v253 = vld [vmem:[%s244 + $0x40] sm:$0xff]
        %v254 = vld [vmem:[%s244 + $0x48] sm:$0xff]
        %v255 = vld [vmem:[%s244 + $0x50] sm:$0xff]
        %v256 = vld [vmem:[%s244 + $0x58] sm:$0xff]
        %v257 = vld [vmem:[%s244 + $0x60] sm:$0xff]
        %v258 = vld [vmem:[%s244 + $0x68] sm:$0xff]
        %v259 = vld [vmem:[%s244 + $0x70] sm:$0xff]
        %v260 = vld [vmem:[%s244 + $0x78] sm:$0xff]
        %v261 = vpack.c.bf16 %v227, %v226
        %v262 = vpack.c.bf16 %v229, %v228
        %v263 = vpack.c.bf16 %v231, %v230
        %v264 = vpack.c.bf16 %v233, %v232
        %v265 = vpack.c.bf16 %v235, %v234
        %v266 = vpack.c.bf16 %v237, %v236
        %v267 = vpack.c.bf16 %v239, %v238
        %v268 = vpack.c.bf16 %v241, %v240
        %v269 = vpack.c.bf16 %v243, %v242
        %270 = vmatprep.subr.bf16.mxu0 0
        %271 = vmatpush1.bf16.msra.mxu0 %v269
        %272 = vmatprep.subr.bf16.mxu0 0
        %273 = vmatpush1.bf16.msra.mxu0 %v268
        %274 = vmatprep.subr.bf16.mxu0 0
        %275 = vmatpush1.bf16.msra.mxu0 %v267
        %276 = vmatprep.subr.bf16.mxu0 0
        %277 = vmatpush1.bf16.msra.mxu0 %v266
        %278 = vmatprep.subr.bf16.mxu0 0
        %279 = vmatpush1.bf16.msra.mxu0 %v265
        %280 = vmatprep.subr.bf16.mxu0 0
        %281 = vmatpush1.bf16.msra.mxu0 %v264
        %282 = vmatprep.subr.bf16.mxu0 0
        %283 = vmatpush1.bf16.msra.mxu0 %v263
        %284 = vmatprep.subr.bf16.mxu0 0
        %285 = vmatpush1.bf16.msra.mxu0 %v262
        %286 = vmatprep.subr.bf16.mxu0 0
        %287 = vmatpush2.bf16.msra.mxu0 0
        %288 = vmatprep.subr.bf16.mxu0 0
        %289 = vmatpush2.bf16.msra.mxu0 0
        %290 = vmatprep.subr.bf16.mxu0 0
        %291 = vmatpush2.bf16.msra.mxu0 0
        %292 = vmatprep.subr.bf16.mxu0 0
        %293 = vmatpush2.bf16.msra.mxu0 0
        %294 = vmatprep.subr.bf16.mxu0 0
        %295 = vmatpush2.bf16.msra.mxu0 0
        %296 = vmatprep.subr.bf16.mxu0 0
        %297 = vmatpush2.bf16.msra.mxu0 0
        %298 = vmatprep.subr.bf16.mxu0 0
        %299 = vmatpush2.bf16.msra.mxu0 0
        %300 = vmatprep.subr.bf16.mxu0 0
        %301 = vmatpush2.bf16.msra.mxu0 0
        %302 = vmatprep.mubr.bf16.mxu0 0
        %303 = vmatmul.mubr.bf16.gmra.mxu0 %v261
        %v304 = vpop.f32.mrf.mxu0
        %v305 = vadd.f32 0.0, %v304
        %v306 = vpop.f32.mrf.mxu0
        %v307 = vpop.f32.mrf.mxu0
        %v308 = vadd.f32 0.0, %v307
        %v309 = vpop.f32.mrf.mxu0
        %310 = vdwg.mxu0
        %v311 = vmax.f32 %v305, 0.0
        %v312 = vmax.f32 %v308, 0.0
        %v313 = vpack.c.bf16 %v312, %v311
        %v314 = vpack.c.bf16 %v246, %v245
        %v315 = vpack.c.bf16 %v248, %v247
        %v316 = vpack.c.bf16 %v250, %v249
        %v317 = vpack.c.bf16 %v252, %v251
        %v318 = vpack.c.bf16 %v254, %v253
        %v319 = vpack.c.bf16 %v256, %v255
        %v320 = vpack.c.bf16 %v258, %v257
        %v321 = vpack.c.bf16 %v260, %v259
        %322 = vmatprep.subr.bf16.mxu0 0
        %323 = vmatpush1.bf16.msra.mxu0 %v321
        %324 = vmatprep.subr.bf16.mxu0 0
        %325 = vmatpush1.bf16.msra.mxu0 %v320
        %326 = vmatprep.subr.bf16.mxu0 0
        %327 = vmatpush1.bf16.msra.mxu0 %v319
        %328 = vmatprep.subr.bf16.mxu0 0
        %329 = vmatpush1.bf16.msra.mxu0 %v318
        %330 = vmatprep.subr.bf16.mxu0 0
        %331 = vmatpush1.bf16.msra.mxu0 %v317
        %332 = vmatprep.subr.bf16.mxu0 0
        %333 = vmatpush1.bf16.msra.mxu0 %v316
        %334 = vmatprep.subr.bf16.mxu0 0
        %335 = vmatpush1.bf16.msra.mxu0 %v315
        %336 = vmatprep.subr.bf16.mxu0 0
        %337 = vmatpush1.bf16.msra.mxu0 %v314
        %338 = vmatprep.subr.bf16.mxu0 0
        %339 = vmatpush2.bf16.msra.mxu0 0
        %340 = vmatprep.subr.bf16.mxu0 0
        %341 = vmatpush2.bf16.msra.mxu0 0
        %342 = vmatprep.subr.bf16.mxu0 0
        %343 = vmatpush2.bf16.msra.mxu0 0
        %344 = vmatprep.subr.bf16.mxu0 0
        %345 = vmatpush2.bf16.msra.mxu0 0
        %346 = vmatprep.subr.bf16.mxu0 0
        %347 = vmatpush2.bf16.msra.mxu0 0
        %348 = vmatprep.subr.bf16.mxu0 0
        %349 = vmatpush2.bf16.msra.mxu0 0
        %350 = vmatprep.subr.bf16.mxu0 0
        %351 = vmatpush2.bf16.msra.mxu0 0
        %352 = vmatprep.subr.bf16.mxu0 0
        %353 = vmatpush2.bf16.msra.mxu0 0
        %354 = vmatprep.mubr.bf16.mxu0 0
        %355 = vmatmul.mubr.bf16.gmra.mxu0 %v313
        %v356 = vpop.f32.mrf.mxu0
        %v357 = vadd.f32 0.0, %v356
        %v358 = vpop.f32.mrf.mxu0
        %v359 = vpop.f32.mrf.mxu0
        %v360 = vadd.f32 0.0, %v359
        %v361 = vpop.f32.mrf.mxu0
        %362 = vdwg.mxu0
        %v363 = vmul.f32 %v357, %v357
        %364 = vadd.xlane.f32.xlu0 %v363
        %v365 = vpop.xlane.xlu0 %364
        %v366 = vmax.f32 %v365, 1e-16
        %v367 = vrsqrt.pop %v366
        %v368 = vmul.f32 %v360, %v360
        %369 = vadd.xlane.f32.xlu0 %v368
        %v370 = vpop.xlane.xlu0 %369
        %v371 = vmax.f32 %v370, 1e-16
        %v372 = vrsqrt.pop %v371
        %v373 = vmul.f32 %v367, 2.0
        %v374 = vmul.f32 %v357, %v373
        %v375 = vmul.f32 %v360, %v372
        %376 = vmatprep.subr.mxu0 0.0
        %377 = vmatpush1.xpose.msra.mxu0 0.0
        %378 = vmatprep.subr.mxu0 0.0
        %379 = vmatpush1.xpose.msra.mxu0 0.0
        %380 = vmatprep.subr.mxu0 0.0
        %381 = vmatpush1.xpose.msra.mxu0 0.0
        %382 = vmatprep.subr.mxu0 0.0
        %383 = vmatpush1.xpose.msra.mxu0 0.0
        %384 = vmatprep.subr.mxu0 0.0
        %385 = vmatpush1.xpose.msra.mxu0 0.0
        %386 = vmatprep.subr.mxu0 0.0
        %387 = vmatpush1.xpose.msra.mxu0 0.0
        %388 = vmatprep.subr.mxu0 0.0
        %389 = vmatpush1.xpose.msra.mxu0 0.0
        %390 = vmatprep.subr.mxu0 0.0
        %391 = vmatpush1.xpose.msra.mxu0 0.0
        %392 = vmatprep.subr.mxu0 0.0
        %393 = vmatpush1.xpose.msra.mxu0 0.0
        %394 = vmatprep.subr.mxu0 0.0
        %395 = vmatpush1.xpose.msra.mxu0 0.0
        %396 = vmatprep.subr.mxu0 0.0
        %397 = vmatpush1.xpose.msra.mxu0 0.0
        %398 = vmatprep.subr.mxu0 0.0
        %399 = vmatpush1.xpose.msra.mxu0 0.0
        %400 = vmatprep.subr.mxu0 0.0
        %401 = vmatpush1.xpose.msra.mxu0 0.0
        %402 = vmatprep.subr.mxu0 0.0
        %403 = vmatpush1.xpose.msra.mxu0 0.0
        %404 = vmatprep.subr.mxu0 0.0
        %405 = vmatpush1.xpose.msra.mxu0 0.0
        %406 = vmatprep.subr.mxu0 0.0
        %407 = vmatpush1.xpose.msra.mxu0 %v374
        %408 = vmatprep.subr.mxu0 0.0
        %409 = vmatpush2.xpose.msra.mxu0 0.0
        %410 = vmatprep.subr.mxu0 0.0
        %411 = vmatpush2.xpose.msra.mxu0 0.0
        %412 = vmatprep.subr.mxu0 0.0
        %413 = vmatpush2.xpose.msra.mxu0 0.0
        %414 = vmatprep.subr.mxu0 0.0
        %415 = vmatpush2.xpose.msra.mxu0 0.0
        %416 = vmatprep.subr.mxu0 0.0
        %417 = vmatpush2.xpose.msra.mxu0 0.0
        %418 = vmatprep.subr.mxu0 0.0
        %419 = vmatpush2.xpose.msra.mxu0 0.0
        %420 = vmatprep.subr.mxu0 0.0
        %421 = vmatpush2.xpose.msra.mxu0 0.0
        %422 = vmatprep.subr.mxu0 0.0
        %423 = vmatpush2.xpose.msra.mxu0 0.0
        %424 = vmatprep.subr.mxu0 0.0
        %425 = vmatpush2.xpose.msra.mxu0 0.0
        %426 = vmatprep.subr.mxu0 0.0
        %427 = vmatpush2.xpose.msra.mxu0 0.0
        %428 = vmatprep.subr.mxu0 0.0
        %429 = vmatpush2.xpose.msra.mxu0 0.0
        %430 = vmatprep.subr.mxu0 0.0
        %431 = vmatpush2.xpose.msra.mxu0 0.0
        %432 = vmatprep.subr.mxu0 0.0
        %433 = vmatpush2.xpose.msra.mxu0 0.0
        %434 = vmatprep.subr.mxu0 0.0
        %435 = vmatpush2.xpose.msra.mxu0 0.0
        %436 = vmatprep.subr.mxu0 0.0
        %437 = vmatpush2.xpose.msra.mxu0 0.0
        %438 = vmatprep.subr.mxu0 0.0
        %439 = vmatpush2.xpose.msra.mxu0 0.0
        %440 = vmatprep.mubr.f32.mxu0 0.0
        %441 = vmatmul.mubr.f32.gmra.mxu0 %v375
        %v442 = vpop.f32.mrf.mxu0
        %v443 = vadd.f32 0.0, %v442
        %v444 = vpop.f32.mrf.mxu0
        %445 = vdwg.mxu0
        %v446 = vmul.f32 %v375, %v374
        %447 = vadd.xlane.f32.xlu0 %v446
        %v448 = vpop.xlane.xlu0 %447
        %v449 = vmul.f32 %v443, 1.442695
        %v450 = vpow.pop %v449
        %vm451 = vcmask 64512
        %v452 = vsel %vm451, %v450, 0.0
        %453 = vadd.xlane.f32.xlu0 %v452
        %v454 = vpop.xlane.xlu0 %453
        %v455 = vlog2.pop %v454
        %v456 = vmul.f32 %v455, 0.6931472
        %v457 = vsub.f32 %v456, %v448
        %vm458 = vcmask 7168
        %v459 = vsel %vm458, %v457, 0.0
        %460 = vadd.xlane.f32.xlu0 %v459
        %v461 = vpop.xlane.xlu0 %460
        %v462 = vrot.slane %v461, 4
        %v463 = vadd.f32 %v461, %v462
        %v464 = vrot.slane %v463, 2
        %v465 = vadd.f32 %v463, %v464
        %v466 = vrot.slane %v465, 1
        %v467 = vadd.f32 %v465, %v466
        %s468 = vtos %v467
        %s469 = smul.f32 %s468, 0.125
        %s470 = smul.u32 %s21, 128
        %s471 = scalar_lea.smem [#allocation8], %s470
        %472 = sst [smem:[%s471]] %s469
        // Predicated region
        $region45: #{tpu_custom_call.1} parent=31 // pred_check
          %p473 = pneg %p107
        $region46: #{tpu_custom_call.1} parent=31 // pred_check_branch
          %475 = sbr.rel (%p473) target = $region48
        $region47: #{tpu_custom_call.1} parent=31 // pred_region
          %s477 = ssub.s32 64, 64
          %478 = vsyncadd [#allocation4], %s477
          %s480 = sshll.u32 %s3, 4
          %s481 = int_to_ptr.vmem [resolvable:$true] %s480
          %483 = dma.smem_to_vmem [#allocation8], 64, %s481, [#allocation4]
        $region48: #{tpu_custom_call.1} parent=31 // pred_fallthru
          _
        // Predicated region
        $region49: #{tpu_custom_call.1} parent=31 // pred_check
          %p484 = pneg %p107
        $region50: #{tpu_custom_call.1} parent=31 // pred_check_branch
          %486 = sbr.rel (%p484) target = $region52
        $region51: #{tpu_custom_call.1} parent=31 // pred_region
          %487 = dma.done [#allocation4], 64
        $region52: #{tpu_custom_call.1} parent=31 // pred_fallthru
          _
        %488 = sfence
      $region32: #{tpu_custom_call.1} parent=5 // pred_fallthru
        _
      %p489 = scmp.le.s32.totalorder 2, %s16
      // Predicated region
      $region53: #{tpu_custom_call.1} parent=5 // pred_check
        %p490 = pneg %p489
      $region54: #{tpu_custom_call.1} parent=5 // pred_check_branch
        %492 = sbr.rel (%p490) target = $region56
      $region55: #{tpu_custom_call.1} parent=5 // pred_region
        %s493 = ssub.s32 %s16, 2
      $region56: #{tpu_custom_call.1} parent=5 // pred_fallthru
        _
    $region6: #{tpu_custom_call.1} parent=1 // loop_footer
      %s20 = sadd.s32 1, %s16
    $region7: #{tpu_custom_call.1} parent=1 // loop_footer_branch
      %15 = sbr.rel target = $region3
    $region8: #{tpu_custom_call.1} parent=1 // loop_exit
      _
    %494 = vsyncpa [#allocation3], 1
    %s495 = scalar_lea.sflag [#allocation3], 1
    %496 = vsyncpa %s495, 1
    %497 = vsyncpa [#allocation6], 1
    %s498 = scalar_lea.sflag [#allocation6], 1
    %499 = vsyncpa %s498, 1
    %500 = vsyncpa [#allocation4], 1
    %s501 = scalar_lea.sflag [#allocation4], 1
    %502 = vsyncpa %s501, 1

</llo_original>
